<compile_context>
chip_gen: v7x
topology: tpu7x:2x2x1
jax: 0.10.0
libtpu: 0.0.40
codegen_flags: <defaults>
</compile_context>

<pallas_src>
import functools

import jax
import jax.numpy as jnp
from jax.experimental import pallas as pl
from jax.experimental.pallas import tpu as pltpu


def _fused_mlp_value_kernel(*refs, num_hidden):
    """refs = (x, w0, b0, ..., w_{H-1}, b_{H-1}, w_head, b_head, out)."""
    x_ref = refs[0]
    o_ref = refs[-1]
    wb = refs[1:-1]

    h = x_ref[...]  # [bt, Din] f32; activations never leave the chip.

    # Hidden Linear(+ReLU) layers on the MXU (bf16 inputs, f32 accumulation).
    for i in range(num_hidden):
        w = wb[2 * i][...]        # [d_in, d_out] bf16 (cast once in wrapper)
        b = wb[2 * i + 1][...]    # [1, d_out]    f32
        h = jnp.dot(h.astype(jnp.bfloat16), w,
                    preferred_element_type=jnp.float32) + b
        h = jnp.maximum(h, 0.0)

    # Final (d_prev -> 1) layer on the VPU/XLU: broadcast multiply + lane
    # reduction in f32 (a 1-lane MXU matmul would waste a whole MXU pass).
    w_head = wb[2 * num_hidden][...]      # [1, d_prev] f32
    b_head = wb[2 * num_hidden + 1][...]  # [1, 1]      f32
    v = jnp.sum(h * w_head, axis=-1, keepdims=True) + b_head  # [bt, 1] f32
    o_ref[...] = v.astype(o_ref.dtype)


def _zero_index_map(i):
    return (0, 0)


def _resident_spec(shape):
    """Full-array block, constant index_map -> VMEM-resident across the grid.

    Buffered(1) drops the pointless second pipeline buffer for blocks whose
    index never changes (halves resident-weight VMEM; important on v7x).
    """
    try:
        return pl.BlockSpec(shape, _zero_index_map, pipeline_mode=pl.Buffered(1))
    except (AttributeError, TypeError):  # older jax without pipeline_mode
        return pl.BlockSpec(shape, _zero_index_map)


def mlp_value_forward(params, x, *, batch_tile=1024):
    """Fused forward pass of MLP_Value. Returns [batch, 1] f32 values."""
    batch, din = x.shape
    num_hidden = len(params) - 1

    # --- batch tiling --------------------------------------------------------
    bt = min(batch, batch_tile)
    # At real PPO batch sizes, keep >= 2 grid steps so dimension_semantics=
    # ("parallel",) can shard the batch across both v7x TensorCores.
    if batch >= 512 and pl.cdiv(batch, bt) < 2:
        half = (batch + 1) // 2
        bt = ((half + 127) // 128) * 128   # round up to a 128-row multiple
    grid = (pl.cdiv(batch, bt),)

    # --- operands & specs ----------------------------------------------------
    flat_params = []
    in_specs = [pl.BlockSpec((bt, din), lambda i: (i, 0))]
    for idx, (w, b) in enumerate(params):
        if idx < num_hidden:
            w = w.astype(jnp.bfloat16)  # MXU-native; halves weight DMA/VMEM
        flat_params += [w, b]
        in_specs.append(_resident_spec(w.shape))
        in_specs.append(_resident_spec(b.shape))

    # --- advisory cost / VMEM budget -----------------------------------------
    flops = 2 * batch * sum(w.shape[0] * w.shape[1] for w, _ in params[:num_hidden])
    flops += 2 * batch * params[num_hidden][0].shape[1]  # head reduce
    bytes_accessed = (x.size * x.dtype.itemsize
                      + sum(p.size * p.dtype.itemsize for p in flat_params)
                      + batch * 4)
    widest = max([din] + [w.shape[1] for w, _ in params])
    param_bytes = sum(p.size * p.dtype.itemsize for p in flat_params)
    block_bytes = 2 * (bt * din * 4 + bt * 4)   # double-buffered x / out blocks
    act_bytes = 4 * bt * widest * 4             # live activation / spill headroom
    vmem_limit = int(min(max(param_bytes + block_bytes + act_bytes + (4 << 20),
                             16 << 20), 64 << 20))

    return pl.pallas_call(
        functools.partial(_fused_mlp_value_kernel, num_hidden=num_hidden),
        out_shape=jax.ShapeDtypeStruct((batch, 1), jnp.float32),
        grid=grid,
        in_specs=in_specs,
        # Direct [bt, 1] store: output HBM traffic is exactly batch*4 bytes
        # (the narrow masked store is negligible at that size).
        out_specs=pl.BlockSpec((bt, 1), lambda i: (i, 0)),
        compiler_params=pltpu.CompilerParams(
            dimension_semantics=("parallel",),
            vmem_limit_bytes=vmem_limit),
        cost_estimate=pl.CostEstimate(
            flops=flops, transcendentals=0, bytes_accessed=bytes_accessed),
    )(x, *flat_params)


def init_mlp_value_params(key, input_dim, hidden_dims):
    """nn.Linear-style init (uniform +/- 1/sqrt(fan_in)).

    Hidden weights stored [in, out]; head weight stored [1, d_prev] so the
    kernel needs no per-call transpose.
    """
    params = []
    prev = input_dim
    for h_dim in hidden_dims:
        key, kw, kb = jax.random.split(key, 3)
        bound = 1.0 / (prev ** 0.5)
        w = jax.random.uniform(kw, (prev, h_dim), jnp.float32, -bound, bound)
        b = jax.random.uniform(kb, (1, h_dim), jnp.float32, -bound, bound)
        params.append((w, b))
        prev = h_dim
    key, kw, kb = jax.random.split(key, 3)
    bound = 1.0 / (prev ** 0.5)
    w = jax.random.uniform(kw, (1, prev), jnp.float32, -bound, bound)  # [1, d_prev]
    b = jax.random.uniform(kb, (1, 1), jnp.float32, -bound, bound)
    params.append((w, b))
    return params


def mlp_value_reference(params, x):
    """Pure-JAX reference with the same numerics structure as the kernel."""
    h = x
    n = len(params)
    for i, (w, b) in enumerate(params):
        if i < n - 1:
            h = jnp.dot(h.astype(jnp.bfloat16), w.astype(jnp.bfloat16),
                        preferred_element_type=jnp.float32) + b
            h = jnp.maximum(h, 0.0)
        else:
            h = jnp.sum(h * w, axis=-1, keepdims=True) + b  # w is [1, d_prev]
    return h


if __name__ == "__main__":
    key = jax.random.PRNGKey(0)
    key, kx = jax.random.split(key)

    input_dim = 16
    hidden_dims = [32, 32]
    params = init_mlp_value_params(key, input_dim, hidden_dims)

    fwd = jax.jit(mlp_value_forward)

    # Small shape (single grid step).
    x_small = jax.random.normal(kx, (8, input_dim), jnp.float32)
    v_small = jax.block_until_ready(fwd(params, x_small))
    ref_small = mlp_value_reference(params, x_small)
    assert v_small.shape == (8, 1), v_small.shape
    assert jnp.allclose(v_small, ref_small, atol=1e-4, rtol=1e-4), (v_small, ref_small)

    # Larger batch: exercises the multi-step ("parallel") batch grid path.
    key, kx2 = jax.random.split(key)
    x_big = jax.random.normal(kx2, (512, input_dim), jnp.float32)
    v_big = jax.block_until_ready(fwd(params, x_big))
    ref_big = mlp_value_reference(params, x_big)
    assert v_big.shape == (512, 1), v_big.shape
    assert jnp.allclose(v_big, ref_big, atol=1e-4, rtol=1e-4)

    print("KERNEL_OK")
</pallas_src>

<mosaic_0001>
module attributes {stable_mosaic.version = 11 : i64} {
  func.func @_fused_mlp_value_kernel(%arg0: i32, %arg1: memref<8x16xf32, #tpu.memory_space<vmem>>, %arg2: memref<16x32xbf16, #tpu.memory_space<vmem>>, %arg3: memref<1x32xf32, #tpu.memory_space<vmem>>, %arg4: memref<32x32xbf16, #tpu.memory_space<vmem>>, %arg5: memref<1x32xf32, #tpu.memory_space<vmem>>, %arg6: memref<1x32xf32, #tpu.memory_space<vmem>>, %arg7: memref<1x1xf32, #tpu.memory_space<vmem>>, %arg8: memref<8x1xf32, #tpu.memory_space<vmem>>) attributes {dimension_semantics = [#tpu.dimension_semantics<parallel>], iteration_bounds = array<i64: 1>, scalar_prefetch = 0 : i64, scratch_operands = 0 : i64, tpu.core_type = #tpu.core_type<tc>, window_params = [{transform_indices = @transform_0, window_bounds = array<i64: 8, 16>}, {pipeline_mode = #tpu.pipeline_mode<synchronous>, transform_indices = @transform_1, window_bounds = array<i64: 16, 32>}, {pipeline_mode = #tpu.pipeline_mode<synchronous>, transform_indices = @transform_2, window_bounds = array<i64: 1, 32>}, {pipeline_mode = #tpu.pipeline_mode<synchronous>, transform_indices = @transform_3, window_bounds = array<i64: 32, 32>}, {pipeline_mode = #tpu.pipeline_mode<synchronous>, transform_indices = @transform_4, window_bounds = array<i64: 1, 32>}, {pipeline_mode = #tpu.pipeline_mode<synchronous>, transform_indices = @transform_5, window_bounds = array<i64: 1, 32>}, {pipeline_mode = #tpu.pipeline_mode<synchronous>, transform_indices = @transform_6, window_bounds = array<i64: 1, 1>}, {transform_indices = @transform_7, window_bounds = array<i64: 8, 1>}]} {
    %c0 = arith.constant 0 : index
    %c0_0 = arith.constant 0 : index
    %0 = vector.load %arg1[%c0, %c0_0] : memref<8x16xf32, #tpu.memory_space<vmem>>, vector<8x16xf32>
    %c0_1 = arith.constant 0 : index
    %c0_2 = arith.constant 0 : index
    %1 = vector.load %arg2[%c0_1, %c0_2] : memref<16x32xbf16, #tpu.memory_space<vmem>>, vector<16x32xbf16>
    %c0_3 = arith.constant 0 : index
    %c0_4 = arith.constant 0 : index
    %2 = vector.load %arg3[%c0_3, %c0_4] : memref<1x32xf32, #tpu.memory_space<vmem>>, vector<1x32xf32>
    %3 = arith.truncf %0 : vector<8x16xf32> to vector<8x16xbf16>
    %cst = arith.constant dense<0.000000e+00> : vector<8x32xf32>
    %4 = tpu.matmul %3, %1, %cst {dimension_numbers = #tpu.dot_dimension_numbers<[1], [0], [0], [1], [0, 0, 1, 1], [], []>} : vector<8x16xbf16>, vector<16x32xbf16>, vector<8x32xf32> -> vector<8x32xf32>
    %5 = vector.broadcast %2 : vector<1x32xf32> to vector<8x32xf32>
    %6 = arith.addf %4, %5 : vector<8x32xf32>
    %cst_5 = arith.constant 0.000000e+00 : f32
    %7 = vector.broadcast %cst_5 : f32 to vector<8x32xf32>
    %8 = arith.maximumf %6, %7 : vector<8x32xf32>
    %c0_6 = arith.constant 0 : index
    %c0_7 = arith.constant 0 : index
    %9 = vector.load %arg4[%c0_6, %c0_7] : memref<32x32xbf16, #tpu.memory_space<vmem>>, vector<32x32xbf16>
    %c0_8 = arith.constant 0 : index
    %c0_9 = arith.constant 0 : index
    %10 = vector.load %arg5[%c0_8, %c0_9] : memref<1x32xf32, #tpu.memory_space<vmem>>, vector<1x32xf32>
    %11 = arith.truncf %8 : vector<8x32xf32> to vector<8x32xbf16>
    %cst_10 = arith.constant dense<0.000000e+00> : vector<8x32xf32>
    %12 = tpu.matmul %11, %9, %cst_10 {dimension_numbers = #tpu.dot_dimension_numbers<[1], [0], [0], [1], [0, 0, 1, 1], [], []>} : vector<8x32xbf16>, vector<32x32xbf16>, vector<8x32xf32> -> vector<8x32xf32>
    %13 = vector.broadcast %10 : vector<1x32xf32> to vector<8x32xf32>
    %14 = arith.addf %12, %13 : vector<8x32xf32>
    %cst_11 = arith.constant 0.000000e+00 : f32
    %15 = vector.broadcast %cst_11 : f32 to vector<8x32xf32>
    %16 = arith.maximumf %14, %15 : vector<8x32xf32>
    %c0_12 = arith.constant 0 : index
    %c0_13 = arith.constant 0 : index
    %17 = vector.load %arg6[%c0_12, %c0_13] : memref<1x32xf32, #tpu.memory_space<vmem>>, vector<1x32xf32>
    %c0_14 = arith.constant 0 : index
    %c0_15 = arith.constant 0 : index
    %18 = vector.load %arg7[%c0_14, %c0_15] : memref<1x1xf32, #tpu.memory_space<vmem>>, vector<1x1xf32>
    %19 = vector.broadcast %17 : vector<1x32xf32> to vector<8x32xf32>
    %20 = arith.mulf %16, %19 : vector<8x32xf32>
    %cst_16 = arith.constant dense<0.000000e+00> : vector<8xf32>
    %21 = vector.multi_reduction <add>, %20, %cst_16 [1] : vector<8x32xf32> to vector<8xf32>
    %22 = vector.shape_cast %21 : vector<8xf32> to vector<8x1xf32>
    %23 = vector.broadcast %18 : vector<1x1xf32> to vector<8x1xf32>
    %24 = arith.addf %22, %23 : vector<8x1xf32>
    %c0_17 = arith.constant 0 : index
    %c0_18 = arith.constant 0 : index
    %25 = vector.load %arg8[%c0_17, %c0_18] : memref<8x1xf32, #tpu.memory_space<vmem>>, vector<8x1xf32>
    tpu.vector_store %arg8[%c0_17, %c0_18], %24 {strides = array<i32>} : memref<8x1xf32, #tpu.memory_space<vmem>>, vector<8x1xf32>,
    return
  }
  func.func @transform_0(%arg0: i32) -> (i32, i32) {
    %c0_i32 = arith.constant 0 : i32
    %c0_i32_0 = arith.constant 0 : i32
    return %arg0, %c0_i32 : i32, i32
  }
  func.func @transform_1(%arg0: i32) -> (i32, i32) {
    %c0_i32 = arith.constant 0 : i32
    %c0_i32_0 = arith.constant 0 : i32
    %c0_i32_1 = arith.constant 0 : i32
    return %c0_i32, %c0_i32_0 : i32, i32
  }
  func.func @transform_2(%arg0: i32) -> (i32, i32) {
    %c0_i32 = arith.constant 0 : i32
    %c0_i32_0 = arith.constant 0 : i32
    %c0_i32_1 = arith.constant 0 : i32
    return %c0_i32, %c0_i32_0 : i32, i32
  }
  func.func @transform_3(%arg0: i32) -> (i32, i32) {
    %c0_i32 = arith.constant 0 : i32
    %c0_i32_0 = arith.constant 0 : i32
    %c0_i32_1 = arith.constant 0 : i32
    return %c0_i32, %c0_i32_0 : i32, i32
  }
  func.func @transform_4(%arg0: i32) -> (i32, i32) {
    %c0_i32 = arith.constant 0 : i32
    %c0_i32_0 = arith.constant 0 : i32
    %c0_i32_1 = arith.constant 0 : i32
    return %c0_i32, %c0_i32_0 : i32, i32
  }
  func.func @transform_5(%arg0: i32) -> (i32, i32) {
    %c0_i32 = arith.constant 0 : i32
    %c0_i32_0 = arith.constant 0 : i32
    %c0_i32_1 = arith.constant 0 : i32
    return %c0_i32, %c0_i32_0 : i32, i32
  }
  func.func @transform_6(%arg0: i32) -> (i32, i32) {
    %c0_i32 = arith.constant 0 : i32
    %c0_i32_0 = arith.constant 0 : i32
    %c0_i32_1 = arith.constant 0 : i32
    return %c0_i32, %c0_i32_0 : i32, i32
  }
  func.func @transform_7(%arg0: i32) -> (i32, i32) {
    %c0_i32 = arith.constant 0 : i32
    %c0_i32_0 = arith.constant 0 : i32
    return %arg0, %c0_i32 : i32, i32
  }
}

</mosaic_0001>

<llo_original>
// kernel: mlp_value_forward.1
$region0: #{mlp_value_forward.1}
  #allocation0 [shape = 'u32[]', space=smem, size = 0x4, offset = 0x4, fixed_abs, tag = 'smem constant byte address 0x4 - core index']
  #allocation1 [shape = 'u32[144,128]{1,0:T(1,128)}', space=vmem, size = 0x12000, scoped, tag = 'internal scratch']
  #allocation2 [shape = 'f32[1,1]{1,0:T(1,128)S(1)}', space=vmem, size = 0x200, scoped, tag = 'scoped memory for mlp_value_forward.1']
  %s0 = inlined_call_operand.vmem [shape: f32[8,16], index: 0, kind: input, shape index: {}]
  %s1 = inlined_call_operand.vmem [shape: bf16[16,32], index: 1, kind: input, shape index: {}]
  %s2 = inlined_call_operand.vmem [shape: f32[1,32], index: 2, kind: input, shape index: {}]
  %s3 = inlined_call_operand.vmem [shape: bf16[32,32], index: 3, kind: input, shape index: {}]
  %s4 = inlined_call_operand.vmem [shape: f32[1,32], index: 4, kind: input, shape index: {}]
  %s5 = inlined_call_operand.vmem [shape: f32[1,32], index: 5, kind: input, shape index: {}]
  %s6 = inlined_call_operand.<no memory space> [shape: f32[1,1], index: 6, kind: input, shape index: {}]
  %s7 = inlined_call_operand.vmem [shape: f32[8,1], index: 7, kind: output, shape index: {}]
  %s8 = sld [smem:[#allocation0]]
  $region38: #{mlp_value_forward.1} parent=0
    _
  %s10 = ssub.s32 1, %s8
  %s11 = scalar_select 0, %s10, %s8
  %v12 = vstv %s6
  %13 = vst [vmem:[#allocation2] sm:$0x1] %v12
  // Predicated region
  $region2: #{mlp_value_forward.1} parent=0 // pred_check
    _
  $region3: #{mlp_value_forward.1} parent=0 // pred_check_branch
    %15 = sbr.rel (0) target = $region5
  $region4: #{mlp_value_forward.1} parent=0 // pred_region
    _
  $region5: #{mlp_value_forward.1} parent=0 // pred_fallthru
    _
  // Predicated region
  $region6: #{mlp_value_forward.1} parent=0 // pred_check
    _
  $region7: #{mlp_value_forward.1} parent=0 // pred_check_branch
    %17 = sbr.rel (0) target = $region9
  $region8: #{mlp_value_forward.1} parent=0 // pred_region
    _
  $region9: #{mlp_value_forward.1} parent=0 // pred_fallthru
    _
  // Predicated region
  $region10: #{mlp_value_forward.1} parent=0 // pred_check
    _
  $region11: #{mlp_value_forward.1} parent=0 // pred_check_branch
    %19 = sbr.rel (0) target = $region13
  $region12: #{mlp_value_forward.1} parent=0 // pred_region
    _
  $region13: #{mlp_value_forward.1} parent=0 // pred_fallthru
    _
  // Predicated region
  $region14: #{mlp_value_forward.1} parent=0 // pred_check
    _
  $region15: #{mlp_value_forward.1} parent=0 // pred_check_branch
    %21 = sbr.rel (0) target = $region17
  $region16: #{mlp_value_forward.1} parent=0 // pred_region
    _
  $region17: #{mlp_value_forward.1} parent=0 // pred_fallthru
    _
  // Predicated region
  $region18: #{mlp_value_forward.1} parent=0 // pred_check
    _
  $region19: #{mlp_value_forward.1} parent=0 // pred_check_branch
    %23 = sbr.rel (0) target = $region21
  $region20: #{mlp_value_forward.1} parent=0 // pred_region
    _
  $region21: #{mlp_value_forward.1} parent=0 // pred_fallthru
    _
  // Predicated region
  $region22: #{mlp_value_forward.1} parent=0 // pred_check
    _
  $region23: #{mlp_value_forward.1} parent=0 // pred_check_branch
    %25 = sbr.rel (0) target = $region25
  $region24: #{mlp_value_forward.1} parent=0 // pred_region
    _
  $region25: #{mlp_value_forward.1} parent=0 // pred_fallthru
    _
  // Predicated region
  $region26: #{mlp_value_forward.1} parent=0 // pred_check
    _
  $region27: #{mlp_value_forward.1} parent=0 // pred_check_branch
    %27 = sbr.rel (0) target = $region29
  $region28: #{mlp_value_forward.1} parent=0 // pred_region
    _
  $region29: #{mlp_value_forward.1} parent=0 // pred_fallthru
    _
  %v29 = vld [vmem:[%s0] sm:$0xff]
  %v30 = vld [vmem:[%s1] sm:$0xf]
  %v31 = vld [vmem:[%s1 + $0x4] sm:$0xf]
  %v32 = vld [vmem:[%s2] sm:$0x1]
  %v33 = vpack.c.bf16 %v29, %v29
  %v35 = vlaneseq
  %v36 = vshrl.u32 %v35, 7
  %v37 = vsub.s32 0, %v36
  %v38 = vrot.slane %v32, %v37
  %v42 = vunpack.c.l.b16 %v30
  %v43 = vunpack.c.l.b16 %v31
  %v44 = vpack.c.b16 %v43, %v42
  %vm46 = vcmask 130048
  %v48 = vsel %vm46, %v33, 0
  %50 = vmatprep.subr.bf16.mxu0 0
  %51 = vmatpush1.bf16.msra.mxu0 %v44
  %52 = vmatprep.subr.bf16.mxu0 0
  %53 = vmatpush1.bf16.msra.mxu0 0
  %54 = vmatprep.subr.bf16.mxu0 0
  %55 = vmatpush1.bf16.msra.mxu0 0
  %56 = vmatprep.subr.bf16.mxu0 0
  %57 = vmatpush1.bf16.msra.mxu0 0
  %58 = vmatprep.subr.bf16.mxu0 0
  %59 = vmatpush1.bf16.msra.mxu0 0
  %60 = vmatprep.subr.bf16.mxu0 0
  %61 = vmatpush1.bf16.msra.mxu0 0
  %62 = vmatprep.subr.bf16.mxu0 0
  %63 = vmatpush1.bf16.msra.mxu0 0
  %64 = vmatprep.subr.bf16.mxu0 0
  %65 = vmatpush1.bf16.msra.mxu0 0
  %66 = vmatprep.subr.bf16.mxu0 0
  %67 = vmatpush1.bf16.msra.mxu0 0
  %68 = vmatprep.subr.bf16.mxu0 0
  %69 = vmatpush1.bf16.msra.mxu0 0
  %70 = vmatprep.subr.bf16.mxu0 0
  %71 = vmatpush1.bf16.msra.mxu0 0
  %72 = vmatprep.subr.bf16.mxu0 0
  %73 = vmatpush1.bf16.msra.mxu0 0
  %74 = vmatprep.subr.bf16.mxu0 0
  %75 = vmatpush1.bf16.msra.mxu0 0
  %76 = vmatprep.subr.bf16.mxu0 0
  %77 = vmatpush1.bf16.msra.mxu0 0
  %78 = vmatprep.subr.bf16.mxu0 0
  %79 = vmatpush1.bf16.msra.mxu0 0
  %80 = vmatprep.subr.bf16.mxu0 0
  %81 = vmatpush1.bf16.msra.mxu0 0
  %82 = vmatprep.mubr.bf16.mxu0 0
  %83 = vmatmul.mubr.bf16.gmra.mrb[0].mxu0 %v48
  %v84 = vpop.f32.mrb[0].mxu0
  %v85 = vadd.f32 %v38, %v84
  %v86 = vpop.f32.mrb[0].mxu0
  %v87 = vpop.f32.mrb[0].mxu0
  %v88 = vpop.f32.mrb[0].mxu0
  %89 = vdwg.mxu0
  %v90 = vmax.f32 %v85, 0.0
  %v91 = vld [vmem:[%s3] sm:$0xf]
  %v92 = vld [vmem:[%s3 + $0x4] sm:$0xf]
  %v93 = vld [vmem:[%s3 + $0x8] sm:$0xf]
  %v94 = vld [vmem:[%s3 + $0xc] sm:$0xf]
  %v95 = vld [vmem:[%s4] sm:$0x1]
  %v96 = vpack.c.bf16 %v90, %v90
  %v98 = vlaneseq
  %v99 = vshrl.u32 %v98, 7
  %v100 = vsub.s32 0, %v99
  %v101 = vrot.slane %v95, %v100
  %v107 = vunpack.c.l.b16 %v91
  %v108 = vunpack.c.l.b16 %v92
  %v109 = vunpack.c.l.b16 %v93
  %v110 = vunpack.c.l.b16 %v94
  %v111 = vpack.c.b16 %v108, %v107
  %v112 = vpack.c.b16 %v110, %v109
  %vm115 = vcmask 261120
  %v117 = vsel %vm115, %v96, 0
  %119 = vmatprep.subr.bf16.mxu0 0
  %120 = vmatpush1.bf16.msra.mxu0 %v111
  %121 = vmatprep.subr.bf16.mxu0 0
  %122 = vmatpush1.bf16.msra.mxu0 %v112
  %123 = vmatprep.subr.bf16.mxu0 0
  %124 = vmatpush1.bf16.msra.mxu0 0
  %125 = vmatprep.subr.bf16.mxu0 0
  %126 = vmatpush1.bf16.msra.mxu0 0
  %127 = vmatprep.subr.bf16.mxu0 0
  %128 = vmatpush1.bf16.msra.mxu0 0
  %129 = vmatprep.subr.bf16.mxu0 0
  %130 = vmatpush1.bf16.msra.mxu0 0
  %131 = vmatprep.subr.bf16.mxu0 0
  %132 = vmatpush1.bf16.msra.mxu0 0
  %133 = vmatprep.subr.bf16.mxu0 0
  %134 = vmatpush1.bf16.msra.mxu0 0
  %135 = vmatprep.subr.bf16.mxu0 0
  %136 = vmatpush1.bf16.msra.mxu0 0
  %137 = vmatprep.subr.bf16.mxu0 0
  %138 = vmatpush1.bf16.msra.mxu0 0
  %139 = vmatprep.subr.bf16.mxu0 0
  %140 = vmatpush1.bf16.msra.mxu0 0
  %141 = vmatprep.subr.bf16.mxu0 0
  %142 = vmatpush1.bf16.msra.mxu0 0
  %143 = vmatprep.subr.bf16.mxu0 0
  %144 = vmatpush1.bf16.msra.mxu0 0
  %145 = vmatprep.subr.bf16.mxu0 0
  %146 = vmatpush1.bf16.msra.mxu0 0
  %147 = vmatprep.subr.bf16.mxu0 0
  %148 = vmatpush1.bf16.msra.mxu0 0
  %149 = vmatprep.subr.bf16.mxu0 0
  %150 = vmatpush1.bf16.msra.mxu0 0
  %151 = vmatprep.mubr.bf16.mxu0 0
  %152 = vmatmul.mubr.bf16.gmra.mrb[0].mxu0 %v117
  %v153 = vpop.f32.mrb[0].mxu0
  %v154 = vadd.f32 %v101, %v153
  %v155 = vpop.f32.mrb[0].mxu0
  %v156 = vpop.f32.mrb[0].mxu0
  %v157 = vpop.f32.mrb[0].mxu0
  %158 = vdwg.mxu0
  %v159 = vmax.f32 %v154, 0.0
  %v160 = vld [vmem:[%s5] sm:$0x1]
  %v161 = vld [vmem:[#allocation2] sm:$0x1]
  %v163 = vlaneseq
  %v164 = vshrl.u32 %v163, 7
  %v165 = vsub.s32 0, %v164
  %v166 = vrot.slane %v160, %v165
  %v168 = vmul.f32 %v159, %v166
  %v169 = vsel %vm115, %v168, 0.0
  %170 = vadd.xlane.f32.xlu0 %v169
  %v171 = vpop.xlane.xlu0 %170
  %v173 = vlaneseq
  %v174 = vshrl.u32 %v173, 7
  %v175 = vsub.s32 0, %v174
  %v176 = vrot.slane %v161, %v175
  %v178 = vadd.f32 %v171, %v176
  %vm179 = vcmask 7168
  %180 = vst.msk [vmem:[%s7] sm:$0xff] %vm179, %v178
  // Predicated region
  $region30: #{mlp_value_forward.1} parent=0 // pred_check
    _
  $region31: #{mlp_value_forward.1} parent=0 // pred_check_branch
    %182 = sbr.rel (0) target = $region33
  $region32: #{mlp_value_forward.1} parent=0 // pred_region
    _
  $region33: #{mlp_value_forward.1} parent=0 // pred_fallthru
    _
  // Predicated region
  $region34: #{mlp_value_forward.1} parent=0 // pred_check
    _
  $region35: #{mlp_value_forward.1} parent=0 // pred_check_branch
    %184 = sbr.rel (0) target = $region37
  $region36: #{mlp_value_forward.1} parent=0 // pred_region
    _
  $region37: #{mlp_value_forward.1} parent=0 // pred_fallthru
    _

</llo_original>
